<compile_context>
chip_gen: v6e
topology: v6e:2x2x1
jax: 0.10.0
libtpu: 0.0.40
codegen_flags: <defaults>
</compile_context>

<pallas_src>
import jax
import jax.numpy as jnp
from jax.experimental import pallas as pl
from jax.experimental.pallas import tpu as pltpu

_LANE = 128
_SUBLANE = 8


def _round_up(x, m):
    return (x + m - 1) // m * m


def _minlstm_fc_kernel(x_ref, w3_ref, b3_ref, wo_ref, bo_ref, out_ref):
    # x_ref : (Bt*T, D)   flattened batch-tile of the input sequence
    # w3_ref: (D, 3*Hp)   fused, lane-padded [wf | wi | wc]
    # b3_ref: (1, 3*Hp)   fused, lane-padded [bf | bi | bc]
    # wo_ref: (Hp, O), bo_ref: (1, O)
    # out_ref: (Bt, O)
    BtT = x_ref.shape[0]
    Hp = wo_ref.shape[0]
    Bt = out_ref.shape[0]
    T = BtT // Bt

    # ---- fused gate projection: one MXU matmul, lane-dense 3*Hp result ----
    gates = jnp.dot(x_ref[...], w3_ref[...],
                    preferred_element_type=jnp.float32) + b3_ref[...]

    # ---- gate math in 2D (Bt*T, .) layout with lane-aligned static slices ----
    # Sigmoid algebra: with ef = exp(-a_f), ei = exp(-a_i),
    #   f_norm = f/(f+i+eps) = (1+ei) / ((1+ef) + (1+ei) + eps*(1+ef)*(1+ei))
    #   i_norm = (1+ef) / (same denominator)
    # -> single fused exp over the 2*Hp (f,i) slab, one shared reciprocal.
    # Clamp at -30 so exp(-(.)) cannot overflow f32 (sigmoid(-30) ~ 1e-13,
    # indistinguishable from 0 at the 1e-4 validation tolerance).
    fi_pre = jnp.maximum(gates[:, :2 * Hp], -30.0)
    e_fi = jnp.exp(-fi_pre)
    pf = 1.0 + e_fi[:, :Hp]            # = 1 / sigmoid(forget pre-activation)
    pi = 1.0 + e_fi[:, Hp:2 * Hp]      # = 1 / sigmoid(input  pre-activation)
    cand = gates[:, 2 * Hp:]

    denom = pf + pi + 1e-8 * (pf * pi)
    inv = pl.reciprocal(denom, approx=False)   # keep off the EUP (saturating slot)
    f_norm = pi * inv
    new_info = (pf * inv) * cand               # input_gate_norm * candidate
    log_f = jnp.log(f_norm + 1e-8)             # safe_log(memory_retention)

    # ---- inclusive suffix cumulative sum of log_f along time ----
    # Hillis-Steele rounds in the 2D (Bt*T, Hp) layout:
    #   suf[r] += suf[r + offset]  when (r mod T) < T - offset
    # The shift is a pltpu.roll (XLU) and the guard is a select against a
    # hoisted iota mask — no concat / zeros copies, no cross-batch leakage.
    t_idx = jax.lax.broadcasted_iota(jnp.int32, (BtT, Hp), 0) % T   # hoisted once
    suf = log_f
    offset = 1
    while offset < T:                                  # log2(T) unrolled rounds
        rolled = pltpu.roll(suf, shift=BtT - offset, axis=0)   # rolled[r] = suf[r+offset]
        suf = suf + jnp.where(t_idx < (T - offset), rolled, 0.0)
        offset *= 2

    # hidden_states[:, -1, :] = sum_t exp(suffix[t]) * new_info[t]
    # (+ exp(total_log_retention) * initial_hidden, but initial_hidden == 0)
    contrib = jnp.exp(suf) * new_info                  # (Bt*T, Hp)
    h_last = jnp.sum(contrib.reshape(Bt, T, Hp), axis=1)   # (Bt, Hp)

    # Fused final fc on the last hidden state (padded Hp rows of wo are zero).
    out_ref[...] = (jnp.dot(h_last, wo_ref[...],
                            preferred_element_type=jnp.float32) + bo_ref[...])


def _pick_batch_tile(B, T, D, Hp, O, vmem_budget=24 * (1 << 20)):
    """Pick a batch tile: multiple of 8, fits VMEM budget, prefers >=4 grid steps."""
    d_pad = max(_round_up(D, _LANE), _LANE)
    o_pad = max(_round_up(O, _LANE), _LANE)

    def est_vmem(bt):
        x_bytes = 2 * bt * T * d_pad * 4                 # double-buffered x tile
        act_bytes = bt * T * (8 * Hp) * 4                # gates + live intermediates
        w_bytes = 2 * (D * 3 * Hp + Hp * o_pad + 3 * Hp + o_pad) * 4
        return x_bytes + act_bytes + w_bytes

    cands = [bt for bt in range(_SUBLANE, B + 1, _SUBLANE) if B % bt == 0]
    if not cands:
        return B                                         # tiny batch: single step
    fitting = [bt for bt in cands if est_vmem(bt) <= vmem_budget]
    if not fitting:
        return min(cands)
    for min_steps in (4, 2, 1):   # >= 2 steps per TC on v7x, then >= 2, then any
        good = [bt for bt in fitting if B // bt >= min_steps]
        if good:
            return max(good)
    return max(fitting)


def price_volume_predictor(x, params, *, batch_tile=None):
    B, T, D = x.shape
    H = params["wf"].shape[1]
    O = params["wo"].shape[1]
    Hp = _round_up(H, _LANE)          # lane-align each gate block

    if batch_tile is None:
        batch_tile = _pick_batch_tile(B, T, D, Hp, O)
    Bt = batch_tile

    # (8, 128) block legality.
    assert B % Bt == 0, (B, Bt)
    assert Bt % _SUBLANE == 0 or Bt == B, ("out block (Bt, O) needs Bt % 8 == 0", Bt)
    assert (Bt * T) % _SUBLANE == 0 or Bt == B, ("x block needs Bt*T % 8 == 0", Bt, T)
    grid = (B // Bt,)

    # Wrapper-side layout plumbing (free): lane-pad + fuse gate weights/biases,
    # pad fc weight rows, flatten x. Padded gate columns are zero -> their
    # candidate (and hence contribution) is exactly zero.
    def pad_cols(w):
        return jnp.pad(w, ((0, 0), (0, Hp - H)))

    w3 = jnp.concatenate([pad_cols(params["wf"]), pad_cols(params["wi"]),
                          pad_cols(params["wc"])], axis=1)           # (D, 3*Hp)
    b3 = jnp.concatenate([pad_cols(params["bf"]), pad_cols(params["bi"]),
                          pad_cols(params["bc"])], axis=1)           # (1, 3*Hp)
    wo = jnp.pad(params["wo"], ((0, Hp - H), (0, 0)))                # (Hp, O)
    bo = params["bo"]                                                # (1, O)
    x2 = x.reshape(B * T, D)

    flops = 2 * B * T * D * (3 * Hp) + 2 * B * Hp * O
    transcendentals = 4 * B * T * Hp          # 2 exps (gates) + log + exp (scan)
    bytes_accessed = 4 * (x2.size + w3.size + b3.size + wo.size + bo.size + B * O)

    return pl.pallas_call(
        _minlstm_fc_kernel,
        out_shape=jax.ShapeDtypeStruct((B, O), jnp.float32),
        grid=grid,
        in_specs=[
            pl.BlockSpec((Bt * T, D), lambda i: (i, 0)),    # x tile per batch-block
            pl.BlockSpec((D, 3 * Hp), lambda i: (0, 0)),    # fused gate weight (resident)
            pl.BlockSpec((1, 3 * Hp), lambda i: (0, 0)),    # fused gate bias   (resident)
            pl.BlockSpec((Hp, O), lambda i: (0, 0)),        # fc weight         (resident)
            pl.BlockSpec((1, O), lambda i: (0, 0)),         # fc bias           (resident)
        ],
        out_specs=pl.BlockSpec((Bt, O), lambda i: (i, 0)),
        compiler_params=pltpu.CompilerParams(
            dimension_semantics=("parallel",),
            vmem_limit_bytes=32 * 1024 * 1024,
        ),
        cost_estimate=pl.CostEstimate(
            flops=flops,
            transcendentals=transcendentals,
            bytes_accessed=bytes_accessed,
        ),
    )(x2, w3, b3, wo, bo)


def _reference_forward(x, params):
    """Pure-JAX transcription of the PyTorch forward (for validation)."""
    B, T, _ = x.shape
    H = params["wf"].shape[1]
    f = jax.nn.sigmoid(x @ params["wf"] + params["bf"])
    i = jax.nn.sigmoid(x @ params["wi"] + params["bi"])
    c = x @ params["wc"] + params["bc"]
    gate_sum = f + i + 1e-8
    f_n, i_n = f / gate_sum, i / gate_sum
    new_info = i_n * c
    log_f = jnp.log(f_n + 1e-8)
    L = jnp.cumsum(log_f, axis=1)
    padded = jnp.concatenate([jnp.zeros((B, 1, H)), L], axis=1)
    scaling = jnp.exp(L[:, -1:, :] - padded[:, :-1, :])
    hidden = jnp.cumsum(scaling * new_info, axis=1)
    hidden = hidden + jnp.exp(L) * jnp.zeros((B, 1, H))   # initial_hidden = 0
    return hidden[:, -1, :] @ params["wo"] + params["bo"]


def _init_params(key, input_size, hidden_size, output_size):
    ks = jax.random.split(key, 8)
    scale = 0.1
    return {
        "wf": scale * jax.random.normal(ks[0], (input_size, hidden_size), jnp.float32),
        "bf": scale * jax.random.normal(ks[1], (1, hidden_size), jnp.float32),
        "wi": scale * jax.random.normal(ks[2], (input_size, hidden_size), jnp.float32),
        "bi": scale * jax.random.normal(ks[3], (1, hidden_size), jnp.float32),
        "wc": scale * jax.random.normal(ks[4], (input_size, hidden_size), jnp.float32),
        "bc": scale * jax.random.normal(ks[5], (1, hidden_size), jnp.float32),
        "wo": scale * jax.random.normal(ks[6], (hidden_size, output_size), jnp.float32),
        "bo": scale * jax.random.normal(ks[7], (1, output_size), jnp.float32),
    }


if __name__ == "__main__":
    # Small shapes; default batch_tile heuristic picks Bt=8 -> grid=(2,),
    # exercising the parallel batch grid while keeping everything tiny.
    B, T, INPUT, HIDDEN, OUTPUT = 16, 8, 4, 32, 4

    key = jax.random.PRNGKey(0)
    k_x, k_p = jax.random.split(key)
    x = jax.random.normal(k_x, (B, T, INPUT), jnp.float32)
    params = _init_params(k_p, INPUT, HIDDEN, OUTPUT)

    out = jax.block_until_ready(price_volume_predictor(x, params))
    ref = jax.block_until_ready(_reference_forward(x, params))

    assert out.shape == (B, OUTPUT), out.shape
    assert jnp.allclose(out, ref, atol=1e-4, rtol=1e-4), (out, ref)
    print("KERNEL_OK")
</pallas_src>

<mosaic_0001>
module attributes {stable_mosaic.version = 11 : i64} {
  func.func @_minlstm_fc_kernel(%arg0: i32, %arg1: memref<64x4xf32, #tpu.memory_space<vmem>>, %arg2: memref<4x384xf32, #tpu.memory_space<vmem>>, %arg3: memref<1x384xf32, #tpu.memory_space<vmem>>, %arg4: memref<128x4xf32, #tpu.memory_space<vmem>>, %arg5: memref<1x4xf32, #tpu.memory_space<vmem>>, %arg6: memref<8x4xf32, #tpu.memory_space<vmem>>) attributes {dimension_semantics = [#tpu.dimension_semantics<parallel>], iteration_bounds = array<i64: 2>, scalar_prefetch = 0 : i64, scratch_operands = 0 : i64, tpu.core_type = #tpu.core_type<tc>, window_params = [{transform_indices = @transform_0, window_bounds = array<i64: 64, 4>}, {pipeline_mode = #tpu.pipeline_mode<synchronous>, transform_indices = @transform_1, window_bounds = array<i64: 4, 384>}, {pipeline_mode = #tpu.pipeline_mode<synchronous>, transform_indices = @transform_2, window_bounds = array<i64: 1, 384>}, {pipeline_mode = #tpu.pipeline_mode<synchronous>, transform_indices = @transform_3, window_bounds = array<i64: 128, 4>}, {pipeline_mode = #tpu.pipeline_mode<synchronous>, transform_indices = @transform_4, window_bounds = array<i64: 1, 4>}, {transform_indices = @transform_5, window_bounds = array<i64: 8, 4>}]} {
    %c0 = arith.constant 0 : index
    %c0_0 = arith.constant 0 : index
    %0 = vector.load %arg1[%c0, %c0_0] : memref<64x4xf32, #tpu.memory_space<vmem>>, vector<64x4xf32>
    %c0_1 = arith.constant 0 : index
    %c0_2 = arith.constant 0 : index
    %1 = vector.load %arg2[%c0_1, %c0_2] : memref<4x384xf32, #tpu.memory_space<vmem>>, vector<4x384xf32>
    %cst = arith.constant dense<0.000000e+00> : vector<64x384xf32>
    %2 = tpu.matmul %0, %1, %cst {dimension_numbers = #tpu.dot_dimension_numbers<[1], [0], [0], [1], [0, 0, 1, 1], [], []>} : vector<64x4xf32>, vector<4x384xf32>, vector<64x384xf32> -> vector<64x384xf32>
    %c0_3 = arith.constant 0 : index
    %c0_4 = arith.constant 0 : index
    %3 = vector.load %arg3[%c0_3, %c0_4] : memref<1x384xf32, #tpu.memory_space<vmem>>, vector<1x384xf32>
    %4 = vector.broadcast %3 : vector<1x384xf32> to vector<64x384xf32>
    %5 = arith.addf %2, %4 : vector<64x384xf32>
    %6 = vector.extract_strided_slice %5 {offsets = [0, 0], sizes = [64, 256], strides = [1, 1]} : vector<64x384xf32> to vector<64x256xf32>
    %cst_5 = arith.constant -3.000000e+01 : f32
    %7 = vector.broadcast %cst_5 : f32 to vector<64x256xf32>
    %8 = arith.maximumf %6, %7 : vector<64x256xf32>
    %cst_6 = arith.constant 0.000000e+00 : f32
    %9 = vector.broadcast %cst_6 : f32 to vector<64x256xf32>
    %10 = arith.subf %9, %8 : vector<64x256xf32>
    %11 = math.exp %10 : vector<64x256xf32>
    %12 = vector.extract_strided_slice %11 {offsets = [0, 0], sizes = [64, 128], strides = [1, 1]} : vector<64x256xf32> to vector<64x128xf32>
    %cst_7 = arith.constant 1.000000e+00 : f32
    %13 = vector.broadcast %cst_7 : f32 to vector<64x128xf32>
    %14 = arith.addf %13, %12 : vector<64x128xf32>
    %15 = vector.extract_strided_slice %11 {offsets = [0, 128], sizes = [64, 128], strides = [1, 1]} : vector<64x256xf32> to vector<64x128xf32>
    %cst_8 = arith.constant 1.000000e+00 : f32
    %16 = vector.broadcast %cst_8 : f32 to vector<64x128xf32>
    %17 = arith.addf %16, %15 : vector<64x128xf32>
    %18 = vector.extract_strided_slice %5 {offsets = [0, 256], sizes = [64, 128], strides = [1, 1]} : vector<64x384xf32> to vector<64x128xf32>
    %19 = arith.addf %14, %17 : vector<64x128xf32>
    %20 = arith.mulf %14, %17 : vector<64x128xf32>
    %cst_9 = arith.constant 9.99999993E-9 : f32
    %21 = vector.broadcast %cst_9 : f32 to vector<64x128xf32>
    %22 = arith.mulf %21, %20 : vector<64x128xf32>
    %23 = arith.addf %19, %22 : vector<64x128xf32>
    %24 = tpu.reciprocal %23 : vector<64x128xf32> -> vector<64x128xf32>
    %25 = arith.mulf %17, %24 : vector<64x128xf32>
    %26 = arith.mulf %14, %24 : vector<64x128xf32>
    %27 = arith.mulf %26, %18 : vector<64x128xf32>
    %cst_10 = arith.constant 9.99999993E-9 : f32
    %28 = vector.broadcast %cst_10 : f32 to vector<64x128xf32>
    %29 = arith.addf %25, %28 : vector<64x128xf32>
    %30 = math.log %29 : vector<64x128xf32>
    %31 = tpu.iota {dimensions = array<i32: 0>} : vector<64x128xi32>
    %c8_i32 = arith.constant 8 : i32
    %c0_i32 = arith.constant 0 : i32
    %32 = arith.cmpi eq, %c8_i32, %c0_i32 : i32
    %c1_i32 = arith.constant 1 : i32
    %33 = arith.select %32, %c1_i32, %c8_i32 : i32
    %34 = vector.broadcast %33 : i32 to vector<64x128xi32>
    %35 = arith.remsi %31, %34 : vector<64x128xi32>
    %c0_i32_11 = arith.constant 0 : i32
    %36 = vector.broadcast %c0_i32_11 : i32 to vector<64x128xi32>
    %37 = arith.cmpi ne, %35, %36 : vector<64x128xi32>
    %c0_i32_12 = arith.constant 0 : i32
    %38 = vector.broadcast %c0_i32_12 : i32 to vector<64x128xi32>
    %39 = arith.cmpi slt, %35, %38 : vector<64x128xi32>
    %c0_i32_13 = arith.constant 0 : i32
    %40 = arith.cmpi slt, %33, %c0_i32_13 : i32
    %41 = vector.broadcast %40 : i1 to vector<64x128xi1>
    %42 = vector.broadcast %41 : vector<64x128xi1> to vector<64x128xi1>
    %43 = arith.xori %39, %42 : vector<64x128xi1>
    %44 = arith.andi %43, %37 : vector<64x128xi1>
    %45 = vector.broadcast %33 : i32 to vector<64x128xi32>
    %46 = arith.addi %35, %45 : vector<64x128xi32>
    %47 = arith.select %44, %46, %35 : vector<64x128xi1>, vector<64x128xi32>
    %c63_i32 = arith.constant 63 : i32
    %48 = tpu.dynamic_rotate %30 by %c63_i32 dim 0 : vector<64x128xf32>, i32 -> vector<64x128xf32>
    %c7_i32 = arith.constant 7 : i32
    %49 = vector.broadcast %c7_i32 : i32 to vector<64x128xi32>
    %50 = arith.cmpi slt, %47, %49 : vector<64x128xi32>
    %cst_14 = arith.constant 0.000000e+00 : f32
    %51 = vector.broadcast %cst_14 : f32 to vector<64x128xf32>
    %52 = arith.select %50, %48, %51 : vector<64x128xi1>, vector<64x128xf32>
    %53 = arith.addf %30, %52 : vector<64x128xf32>
    %c62_i32 = arith.constant 62 : i32
    %54 = tpu.dynamic_rotate %53 by %c62_i32 dim 0 : vector<64x128xf32>, i32 -> vector<64x128xf32>
    %c6_i32 = arith.constant 6 : i32
    %55 = vector.broadcast %c6_i32 : i32 to vector<64x128xi32>
    %56 = arith.cmpi slt, %47, %55 : vector<64x128xi32>
    %cst_15 = arith.constant 0.000000e+00 : f32
    %57 = vector.broadcast %cst_15 : f32 to vector<64x128xf32>
    %58 = arith.select %56, %54, %57 : vector<64x128xi1>, vector<64x128xf32>
    %59 = arith.addf %53, %58 : vector<64x128xf32>
    %c60_i32 = arith.constant 60 : i32
    %60 = tpu.dynamic_rotate %59 by %c60_i32 dim 0 : vector<64x128xf32>, i32 -> vector<64x128xf32>
    %c4_i32 = arith.constant 4 : i32
    %61 = vector.broadcast %c4_i32 : i32 to vector<64x128xi32>
    %62 = arith.cmpi slt, %47, %61 : vector<64x128xi32>
    %cst_16 = arith.constant 0.000000e+00 : f32
    %63 = vector.broadcast %cst_16 : f32 to vector<64x128xf32>
    %64 = arith.select %62, %60, %63 : vector<64x128xi1>, vector<64x128xf32>
    %65 = arith.addf %59, %64 : vector<64x128xf32>
    %66 = math.exp %65 : vector<64x128xf32>
    %67 = arith.mulf %66, %27 : vector<64x128xf32>
    %68 = vector.shape_cast %67 : vector<64x128xf32> to vector<8x8x128xf32>
    %cst_17 = arith.constant dense<0.000000e+00> : vector<8x128xf32>
    %69 = vector.multi_reduction <add>, %68, %cst_17 [1] : vector<8x8x128xf32> to vector<8x128xf32>
    %c0_18 = arith.constant 0 : index
    %c0_19 = arith.constant 0 : index
    %70 = vector.load %arg4[%c0_18, %c0_19] : memref<128x4xf32, #tpu.memory_space<vmem>>, vector<128x4xf32>
    %cst_20 = arith.constant dense<0.000000e+00> : vector<8x4xf32>
    %71 = tpu.matmul %69, %70, %cst_20 {dimension_numbers = #tpu.dot_dimension_numbers<[1], [0], [0], [1], [0, 0, 1, 1], [], []>} : vector<8x128xf32>, vector<128x4xf32>, vector<8x4xf32> -> vector<8x4xf32>
    %c0_21 = arith.constant 0 : index
    %c0_22 = arith.constant 0 : index
    %72 = vector.load %arg5[%c0_21, %c0_22] : memref<1x4xf32, #tpu.memory_space<vmem>>, vector<1x4xf32>
    %73 = vector.broadcast %72 : vector<1x4xf32> to vector<8x4xf32>
    %74 = arith.addf %71, %73 : vector<8x4xf32>
    %c0_23 = arith.constant 0 : index
    %c0_24 = arith.constant 0 : index
    %75 = vector.load %arg6[%c0_23, %c0_24] : memref<8x4xf32, #tpu.memory_space<vmem>>, vector<8x4xf32>
    tpu.vector_store %arg6[%c0_23, %c0_24], %74 {strides = array<i32>} : memref<8x4xf32, #tpu.memory_space<vmem>>, vector<8x4xf32>,
    return
  }
  func.func @transform_0(%arg0: i32) -> (i32, i32) {
    %c0_i32 = arith.constant 0 : i32
    %c0_i32_0 = arith.constant 0 : i32
    return %arg0, %c0_i32 : i32, i32
  }
  func.func @transform_1(%arg0: i32) -> (i32, i32) {
    %c0_i32 = arith.constant 0 : i32
    %c0_i32_0 = arith.constant 0 : i32
    %c0_i32_1 = arith.constant 0 : i32
    return %c0_i32, %c0_i32_0 : i32, i32
  }
  func.func @transform_2(%arg0: i32) -> (i32, i32) {
    %c0_i32 = arith.constant 0 : i32
    %c0_i32_0 = arith.constant 0 : i32
    %c0_i32_1 = arith.constant 0 : i32
    return %c0_i32, %c0_i32_0 : i32, i32
  }
  func.func @transform_3(%arg0: i32) -> (i32, i32) {
    %c0_i32 = arith.constant 0 : i32
    %c0_i32_0 = arith.constant 0 : i32
    %c0_i32_1 = arith.constant 0 : i32
    return %c0_i32, %c0_i32_0 : i32, i32
  }
  func.func @transform_4(%arg0: i32) -> (i32, i32) {
    %c0_i32 = arith.constant 0 : i32
    %c0_i32_0 = arith.constant 0 : i32
    %c0_i32_1 = arith.constant 0 : i32
    return %c0_i32, %c0_i32_0 : i32, i32
  }
  func.func @transform_5(%arg0: i32) -> (i32, i32) {
    %c0_i32 = arith.constant 0 : i32
    %c0_i32_0 = arith.constant 0 : i32
    return %arg0, %c0_i32 : i32, i32
  }
}

</mosaic_0001>

<llo_original>
// kernel: tpu_custom_call.1
$region0: #{tpu_custom_call.1}
  #allocation0 [shape = 'u32[]', space=smem, size = 0x4, offset = 0x4, fixed_abs, tag = 'smem constant byte address 0x4 - core index']
  #allocation1 [shape = 'u32[144,128]{1,0:T(1,128)}', space=vmem, size = 0x12000, scoped, tag = 'internal scratch']
  %s0 = inlined_call_operand.vmem [shape: f32[128,4], index: 0, kind: input, shape index: {}]
  %s1 = inlined_call_operand.vmem [shape: f32[4,384], index: 1, kind: input, shape index: {}]
  %s2 = inlined_call_operand.vmem [shape: f32[1,384], index: 2, kind: input, shape index: {}]
  %s3 = inlined_call_operand.vmem [shape: f32[128,4], index: 3, kind: input, shape index: {}]
  %s4 = inlined_call_operand.vmem [shape: f32[1,4], index: 4, kind: input, shape index: {}]
  %s5 = inlined_call_operand.vmem [shape: f32[16,4], index: 5, kind: output, shape index: {}]
  %s6 = sld [smem:[#allocation0]]
  $region53: #{tpu_custom_call.1} parent=0
    _
  %s8 = ssub.s32 1, %s6
  %s9 = scalar_select 0, %s8, %s6
  loop: start=0, step=1, limit=4
  $region2: #{tpu_custom_call.1} parent=0 // loop_pre_header
    _
  $region3: #{tpu_custom_call.1} parent=0 // loop_header
    %s11 = sphi 0, %s15
    %p12 = scmp.ge.s32.totalorder %s11, 4
    %s21 = sphi 0, %s23
    %s24 = sphi 0, %s21
    %s25 = sphi 0, %s24
    %s41 = sphi 0, %s25
    %s45 = sphi 0, %s45
    %s47 = sphi 0, %s45
    %s48 = sphi 0, %s47
    %s62 = sphi 0, %s48
    %s66 = sphi 0, %s66
    %s68 = sphi 0, %s66
    %s69 = sphi 0, %s68
    %s83 = sphi 0, %s69
    %s87 = sphi 0, %s87
    %s89 = sphi 0, %s87
    %s90 = sphi 0, %s89
    %s104 = sphi 0, %s90
    %s108 = sphi 0, %s108
    %s110 = sphi 0, %s108
    %s111 = sphi 0, %s110
    %s125 = sphi 0, %s111
    %s131 = sphi 0, %s133
    %s134 = sphi 0, %s131
    %s135 = sphi 0, %s134
    %s151 = sphi 0, %s135
  $region4: #{tpu_custom_call.1} parent=0 // loop_header_branch
    %14 = sbr.rel (%p12) target = $region8
  $region5: #{tpu_custom_call.1} parent=0 // loop_body
    %s16 = ssub.s32 %s11, 1
    %s17 = ssub.s32 %s11, 2
    %s18 = sadd.s32 %s11, 1
    %s19 = ssub.s32 %s11, %s18
    %p20 = scmp.eq.s32.totalorder %s19, 0
    %s22 = sadd.s32 %s21, 1
    %s23 = scalar_select %p20, %s21, %s22
    %p26 = pneg %p20
    %p27 = scmp.eq.s32.totalorder %s11, 1
    %p28 = por %p26, %p27
    %p29 = scmp.ne.s32.totalorder %s21, %s24
    %p30 = scmp.eq.s32.totalorder %s11, 0
    %p31 = por %p29, %p30
    %p32 = scmp.ne.s32.totalorder %s21, %s24
    %p33 = scmp.eq.s32.totalorder %s16, 1
    %p34 = por %p32, %p33
    %p35 = scmp.ne.s32.totalorder %s24, %s25
    %p36 = scmp.eq.s32.totalorder %s16, 0
    %p37 = por %p35, %p36
    %p38 = scmp.ne.s32.totalorder %s24, %s25
    %p39 = scmp.eq.s32.totalorder %s17, 1
    %p40 = por %p38, %p39
    %p42 = scmp.ne.s32.totalorder %s25, %s41
    %p43 = scmp.eq.s32.totalorder %s17, 0
    %p44 = por %p42, %p43
    %s46 = sadd.s32 %s45, 1
    %p49 = scmp.eq.s32.totalorder %s11, 1
    %p50 = scmp.ne.s32.totalorder %s45, %s47
    %p51 = scmp.eq.s32.totalorder %s11, 0
    %p52 = por %p50, %p51
    %p53 = scmp.ne.s32.totalorder %s45, %s47
    %p54 = scmp.eq.s32.totalorder %s16, 1
    %p55 = por %p53, %p54
    %p56 = scmp.ne.s32.totalorder %s47, %s48
    %p57 = scmp.eq.s32.totalorder %s16, 0
    %p58 = por %p56, %p57
    %p59 = scmp.ne.s32.totalorder %s47, %s48
    %p60 = scmp.eq.s32.totalorder %s17, 1
    %p61 = por %p59, %p60
    %p63 = scmp.ne.s32.totalorder %s48, %s62
    %p64 = scmp.eq.s32.totalorder %s17, 0
    %p65 = por %p63, %p64
    %s67 = sadd.s32 %s66, 1
    %p70 = scmp.eq.s32.totalorder %s11, 1
    %p71 = scmp.ne.s32.totalorder %s66, %s68
    %p72 = scmp.eq.s32.totalorder %s11, 0
    %p73 = por %p71, %p72
    %p74 = scmp.ne.s32.totalorder %s66, %s68
    %p75 = scmp.eq.s32.totalorder %s16, 1
    %p76 = por %p74, %p75
    %p77 = scmp.ne.s32.totalorder %s68, %s69
    %p78 = scmp.eq.s32.totalorder %s16, 0
    %p79 = por %p77, %p78
    %p80 = scmp.ne.s32.totalorder %s68, %s69
    %p81 = scmp.eq.s32.totalorder %s17, 1
    %p82 = por %p80, %p81
    %p84 = scmp.ne.s32.totalorder %s69, %s83
    %p85 = scmp.eq.s32.totalorder %s17, 0
    %p86 = por %p84, %p85
    %s88 = sadd.s32 %s87, 1
    %p91 = scmp.eq.s32.totalorder %s11, 1
    %p92 = scmp.ne.s32.totalorder %s87, %s89
    %p93 = scmp.eq.s32.totalorder %s11, 0
    %p94 = por %p92, %p93
    %p95 = scmp.ne.s32.totalorder %s87, %s89
    %p96 = scmp.eq.s32.totalorder %s16, 1
    %p97 = por %p95, %p96
    %p98 = scmp.ne.s32.totalorder %s89, %s90
    %p99 = scmp.eq.s32.totalorder %s16, 0
    %p100 = por %p98, %p99
    %p101 = scmp.ne.s32.totalorder %s89, %s90
    %p102 = scmp.eq.s32.totalorder %s17, 1
    %p103 = por %p101, %p102
    %p105 = scmp.ne.s32.totalorder %s90, %s104
    %p106 = scmp.eq.s32.totalorder %s17, 0
    %p107 = por %p105, %p106
    %s109 = sadd.s32 %s108, 1
    %p112 = scmp.eq.s32.totalorder %s11, 1
    %p113 = scmp.ne.s32.totalorder %s108, %s110
    %p114 = scmp.eq.s32.totalorder %s11, 0
    %p115 = por %p113, %p114
    %p116 = scmp.ne.s32.totalorder %s108, %s110
    %p117 = scmp.eq.s32.totalorder %s16, 1
    %p118 = por %p116, %p117
    %p119 = scmp.ne.s32.totalorder %s110, %s111
    %p120 = scmp.eq.s32.totalorder %s16, 0
    %p121 = por %p119, %p120
    %p122 = scmp.ne.s32.totalorder %s110, %s111
    %p123 = scmp.eq.s32.totalorder %s17, 1
    %p124 = por %p122, %p123
    %p126 = scmp.ne.s32.totalorder %s111, %s125
    %p127 = scmp.eq.s32.totalorder %s17, 0
    %p128 = por %p126, %p127
    %s129 = ssub.s32 %s11, %s18
    %p130 = scmp.eq.s32.totalorder %s129, 0
    %s132 = sadd.s32 %s131, 1
    %s133 = scalar_select %p130, %s131, %s132
    %p136 = pneg %p130
    %p137 = scmp.eq.s32.totalorder %s11, 1
    %p138 = por %p136, %p137
    %p139 = scmp.ne.s32.totalorder %s131, %s134
    %p140 = scmp.eq.s32.totalorder %s11, 0
    %p141 = por %p139, %p140
    %p142 = scmp.ne.s32.totalorder %s131, %s134
    %p143 = scmp.eq.s32.totalorder %s16, 1
    %p144 = por %p142, %p143
    %p145 = scmp.ne.s32.totalorder %s134, %s135
    %p146 = scmp.eq.s32.totalorder %s16, 0
    %p147 = por %p145, %p146
    %p148 = scmp.ne.s32.totalorder %s134, %s135
    %p149 = scmp.eq.s32.totalorder %s17, 1
    %p150 = por %p148, %p149
    %p152 = scmp.ne.s32.totalorder %s135, %s151
    %p153 = scmp.eq.s32.totalorder %s17, 0
    %p154 = por %p152, %p153
    %p155 = scmp.le.s32.totalorder 1, %s11
    %p156 = scmp.lt.s32.totalorder %s11, 3
    %p157 = pnand %p155, %p156
    %p158 = pneg %p157
    // Predicated region
    $region9: #{tpu_custom_call.1} parent=5 // pred_check
      _
    $region10: #{tpu_custom_call.1} parent=5 // pred_check_branch
      %160 = sbr.rel (%p157) target = $region12
    $region11: #{tpu_custom_call.1} parent=5 // pred_region
      %s161 = ssub.s32 %s11, 1
      // Predicated region
      $region13: #{tpu_custom_call.1} parent=11 // pred_check
        %p162 = pneg %p58
      $region14: #{tpu_custom_call.1} parent=11 // pred_check_branch
        %164 = sbr.rel (%p162) target = $region16
      $region15: #{tpu_custom_call.1} parent=11 // pred_region
        _
      $region16: #{tpu_custom_call.1} parent=11 // pred_fallthru
        _
      // Predicated region
      $region17: #{tpu_custom_call.1} parent=11 // pred_check
        %p165 = pneg %p79
      $region18: #{tpu_custom_call.1} parent=11 // pred_check_branch
        %167 = sbr.rel (%p165) target = $region20
      $region19: #{tpu_custom_call.1} parent=11 // pred_region
        _
      $region20: #{tpu_custom_call.1} parent=11 // pred_fallthru
        _
      // Predicated region
      $region21: #{tpu_custom_call.1} parent=11 // pred_check
        %p168 = pneg %p100
      $region22: #{tpu_custom_call.1} parent=11 // pred_check_branch
        %170 = sbr.rel (%p168) target = $region24
      $region23: #{tpu_custom_call.1} parent=11 // pred_region
        _
      $region24: #{tpu_custom_call.1} parent=11 // pred_fallthru
        _
      // Predicated region
      $region25: #{tpu_custom_call.1} parent=11 // pred_check
        %p171 = pneg %p121
      $region26: #{tpu_custom_call.1} parent=11 // pred_check_branch
        %173 = sbr.rel (%p171) target = $region28
      $region27: #{tpu_custom_call.1} parent=11 // pred_region
        _
      $region28: #{tpu_custom_call.1} parent=11 // pred_fallthru
        _
    $region12: #{tpu_custom_call.1} parent=5 // pred_fallthru
      _
    %p174 = scmp.lt.s32.totalorder %s11, 2
    // Predicated region
    $region29: #{tpu_custom_call.1} parent=5 // pred_check
      %p175 = pneg %p174
    $region30: #{tpu_custom_call.1} parent=5 // pred_check_branch
      %177 = sbr.rel (%p175) target = $region32
    $region31: #{tpu_custom_call.1} parent=5 // pred_region
      // Predicated region
      $region33: #{tpu_custom_call.1} parent=31 // pred_check
        %p178 = pneg %p31
      $region34: #{tpu_custom_call.1} parent=31 // pred_check_branch
        %180 = sbr.rel (%p178) target = $region36
      $region35: #{tpu_custom_call.1} parent=31 // pred_region
        %s181 = smul.u32 8, %s11
        %p182 = scmp.lt.s32.totalorder %s181, 15
        %s183 = scalar_select %p182, %s181, 15
        %s184 = smul.addr %s183, 8
        %s185 = scalar_lea.vmem %s0, %s184
        %s186 = smul.u32 8, %s11
      $region36: #{tpu_custom_call.1} parent=31 // pred_fallthru
        _
    $region32: #{tpu_custom_call.1} parent=5 // pred_fallthru
      _
    %p187 = scmp.le.s32.totalorder 1, %s11
    %p188 = scmp.lt.s32.totalorder %s11, 3
    %p189 = pnand %p187, %p188
    %p190 = pneg %p189
    // Predicated region
    $region37: #{tpu_custom_call.1} parent=5 // pred_check
      _
    $region38: #{tpu_custom_call.1} parent=5 // pred_check_branch
      %192 = sbr.rel (%p189) target = $region40
    $region39: #{tpu_custom_call.1} parent=5 // pred_region
      %s193 = ssub.s32 %s11, 1
      %s194 = smul.u32 8, %s16
      %p195 = scmp.lt.s32.totalorder %s194, 15
      %s196 = scalar_select %p195, %s194, 15
      %s197 = smul.addr %s196, 8
      %s198 = scalar_lea.vmem %s0, %s197
      %p199 = pneg %p37
      %p200 = pneg %p34
      %p201 = pneg %p58
      %p202 = pneg %p55
      %p203 = pneg %p79
      %p204 = pneg %p76
      %p205 = pneg %p100
      %p206 = pneg %p97
      %p207 = pneg %p121
      %p208 = pneg %p118
      %p209 = pneg %p147
      %p210 = pneg %p144
      %p211 = scmp.lt.s32.totalorder %s16, 1
      %s212 = scalar_select %p211, %s16, 1
      %s213 = smul.addr %s212, 8
      %s214 = scalar_lea.vmem %s5, %s213
      %s215 = smul.u32 8, %s16
      %p216 = scmp.lt.s32.totalorder %s215, 15
      %s217 = scalar_select %p216, %s215, 15
      %s218 = smul.addr %s217, 8
      %s219 = scalar_lea.vmem %s0, %s218
      %s220 = smul.u32 8, %s16
      %p221 = scmp.lt.s32.totalorder %s16, 1
      %s222 = scalar_select %p221, %s16, 1
      %s223 = smul.addr %s222, 8
      %s224 = scalar_lea.vmem %s5, %s223
      %v225 = vld [vmem:[%s219] sm:$0xff]
      %v226 = vld [vmem:[%s219 + $0x8] sm:$0xff]
      %v227 = vld [vmem:[%s219 + $0x10] sm:$0xff]
      %v228 = vld [vmem:[%s219 + $0x18] sm:$0xff]
      %v229 = vld [vmem:[%s219 + $0x20] sm:$0xff]
      %v230 = vld [vmem:[%s219 + $0x28] sm:$0xff]
      %v231 = vld [vmem:[%s219 + $0x30] sm:$0xff]
      %v232 = vld [vmem:[%s219 + $0x38] sm:$0xff]
      %v233 = vld [vmem:[%s1] sm:$0xff]
      %v234 = vld [vmem:[%s1 + $0x8] sm:$0xf]
      %v235 = vld [vmem:[%s2] sm:$0x7]
      %v237 = vlaneseq
      %v238 = vshrl.u32 %v237, 7
      %v239 = vsub.s32 0, %v238
      %v240 = vrot.slane %v235, %v239
      %v241 = vlaneseq
      %v242 = vshrl.u32 %v241, 7
      %v243 = vsub.s32 1, %v242
      %v244 = vrot.slane %v235, %v243
      %v245 = vlaneseq
      %v246 = vshrl.u32 %v245, 7
      %v247 = vsub.s32 2, %v246
      %v248 = vrot.slane %v235, %v247
      %v254 = vcombine.high %v233, %v233
      %vm255 = vcmask 31744
      %v257 = vsel %vm255, %v225, 0
      %v260 = vsel %vm255, %v226, 0
      %v263 = vsel %vm255, %v227, 0
      %v266 = vsel %vm255, %v228, 0
      %v269 = vsel %vm255, %v229, 0
      %v272 = vsel %vm255, %v230, 0
      %v275 = vsel %vm255, %v231, 0
      %v278 = vsel %vm255, %v232, 0
      %vm280 = vcmask 1043456
      %v281 = vsel %vm280, %v233, 0
      %v283 = vsel %vm280, %v254, 0
      %v285 = vsel %vm280, %v234, 0
      %287 = vmatprep.subr.mxu0 0.0
      %288 = vmatpush1.msra.mxu0 0.0
      %289 = vmatprep.subr.mxu0 0.0
      %290 = vmatpush1.msra.mxu0 0.0
      %291 = vmatprep.subr.mxu0 0.0
      %292 = vmatpush1.msra.mxu0 0.0
      %293 = vmatprep.subr.mxu0 0.0
      %294 = vmatpush1.msra.mxu0 0.0
      %295 = vmatprep.subr.mxu0 0.0
      %296 = vmatpush1.msra.mxu0 0.0
      %297 = vmatprep.subr.mxu0 0.0
      %298 = vmatpush1.msra.mxu0 0.0
      %299 = vmatprep.subr.mxu0 0.0
      %300 = vmatpush1.msra.mxu0 0.0
      %301 = vmatprep.subr.mxu0 0.0
      %302 = vmatpush1.msra.mxu0 0.0
      %303 = vmatprep.subr.mxu0 0.0
      %304 = vmatpush1.msra.mxu0 0.0
      %305 = vmatprep.subr.mxu0 0.0
      %306 = vmatpush1.msra.mxu0 0.0
      %307 = vmatprep.subr.mxu0 0.0
      %308 = vmatpush1.msra.mxu0 0.0
      %309 = vmatprep.subr.mxu0 0.0
      %310 = vmatpush1.msra.mxu0 0.0
      %311 = vmatprep.subr.mxu0 0.0
      %312 = vmatpush1.msra.mxu0 0.0
      %313 = vmatprep.subr.mxu0 0.0
      %314 = vmatpush1.msra.mxu0 0.0
      %315 = vmatprep.subr.mxu0 0.0
      %316 = vmatpush1.msra.mxu0 0.0
      %317 = vmatprep.subr.mxu0 %v283
      %318 = vmatpush1.msra.mxu0 %v281
      %319 = vmatprep.subr.mxu0 0.0
      %320 = vmatpush2.msra.mxu0 0.0
      %321 = vmatprep.subr.mxu0 0.0
      %322 = vmatpush2.msra.mxu0 0.0
      %323 = vmatprep.subr.mxu0 0.0
      %324 = vmatpush2.msra.mxu0 0.0
      %325 = vmatprep.subr.mxu0 0.0
      %326 = vmatpush2.msra.mxu0 0.0
      %327 = vmatprep.subr.mxu0 0.0
      %328 = vmatpush2.msra.mxu0 0.0
      %329 = vmatprep.subr.mxu0 0.0
      %330 = vmatpush2.msra.mxu0 0.0
      %331 = vmatprep.subr.mxu0 0.0
      %332 = vmatpush2.msra.mxu0 0.0
      %333 = vmatprep.subr.mxu0 0.0
      %334 = vmatpush2.msra.mxu0 0.0
      %335 = vmatprep.subr.mxu0 0.0
      %336 = vmatpush2.msra.mxu0 0.0
      %337 = vmatprep.subr.mxu0 0.0
      %338 = vmatpush2.msra.mxu0 0.0
      %339 = vmatprep.subr.mxu0 0.0
      %340 = vmatpush2.msra.mxu0 0.0
      %341 = vmatprep.subr.mxu0 0.0
      %342 = vmatpush2.msra.mxu0 0.0
      %343 = vmatprep.subr.mxu0 0.0
      %344 = vmatpush2.msra.mxu0 0.0
      %345 = vmatprep.subr.mxu0 0.0
      %346 = vmatpush2.msra.mxu0 0.0
      %347 = vmatprep.subr.mxu0 0.0
      %348 = vmatpush2.msra.mxu0 0.0
      %349 = vmatprep.subr.mxu0 0.0
      %350 = vmatpush2.msra.mxu0 0.0
      %351 = vmatprep.mubr.f32.mxu0 0.0
      %352 = vmatmul.mubr.f32.gmra.mxu0 %v257
      %v353 = vpop.f32.mrf.mxu0
      %v354 = vadd.f32 %v240, %v353
      %v355 = vpop.f32.mrf.mxu0
      %v356 = vadd.f32 %v244, %v355
      %357 = vmatprep.mubr.f32.mxu0 0.0
      %358 = vmatmul.mubr.f32.gmra.mxu0 %v260
      %v359 = vpop.f32.mrf.mxu0
      %v360 = vadd.f32 %v240, %v359
      %v361 = vpop.f32.mrf.mxu0
      %v362 = vadd.f32 %v244, %v361
      %363 = vmatprep.mubr.f32.mxu0 0.0
      %364 = vmatmul.mubr.f32.gmra.mxu0 %v263
      %v365 = vpop.f32.mrf.mxu0
      %v366 = vadd.f32 %v240, %v365
      %v367 = vpop.f32.mrf.mxu0
      %v368 = vadd.f32 %v244, %v367
      %369 = vmatprep.mubr.f32.mxu0 0.0
      %370 = vmatmul.mubr.f32.gmra.mxu0 %v266
      %v371 = vpop.f32.mrf.mxu0
      %v372 = vadd.f32 %v240, %v371
      %v373 = vpop.f32.mrf.mxu0
      %v374 = vadd.f32 %v244, %v373
      %375 = vmatprep.mubr.f32.mxu0 0.0
      %376 = vmatmul.mubr.f32.gmra.mxu0 %v269
      %v377 = vpop.f32.mrf.mxu0
      %v378 = vadd.f32 %v240, %v377
      %v379 = vpop.f32.mrf.mxu0
      %v380 = vadd.f32 %v244, %v379
      %381 = vmatprep.mubr.f32.mxu0 0.0
      %382 = vmatmul.mubr.f32.gmra.mxu0 %v272
      %v383 = vpop.f32.mrf.mxu0
      %v384 = vadd.f32 %v240, %v383
      %v385 = vpop.f32.mrf.mxu0
      %v386 = vadd.f32 %v244, %v385
      %387 = vmatprep.mubr.f32.mxu0 0.0
      %388 = vmatmul.mubr.f32.gmra.mxu0 %v275
      %v389 = vpop.f32.mrf.mxu0
      %v390 = vadd.f32 %v240, %v389
      %v391 = vpop.f32.mrf.mxu0
      %v392 = vadd.f32 %v244, %v391
      %393 = vmatprep.mubr.f32.mxu0 0.0
      %394 = vmatmul.mubr.f32.gmra.mxu0 %v278
      %v395 = vpop.f32.mrf.mxu0
      %v396 = vadd.f32 %v240, %v395
      %v397 = vpop.f32.mrf.mxu0
      %v398 = vadd.f32 %v244, %v397
      %399 = vdwg.mxu0
      %400 = vmatprep.subr.mxu0 0.0
      %401 = vmatpush1.msra.mxu0 0.0
      %402 = vmatprep.subr.mxu0 0.0
      %403 = vmatpush1.msra.mxu0 0.0
      %404 = vmatprep.subr.mxu0 0.0
      %405 = vmatpush1.msra.mxu0 0.0
      %406 = vmatprep.subr.mxu0 0.0
      %407 = vmatpush1.msra.mxu0 0.0
      %408 = vmatprep.subr.mxu0 0.0
      %409 = vmatpush1.msra.mxu0 0.0
      %410 = vmatprep.subr.mxu0 0.0
      %411 = vmatpush1.msra.mxu0 0.0
      %412 = vmatprep.subr.mxu0 0.0
      %413 = vmatpush1.msra.mxu0 0.0
      %414 = vmatprep.subr.mxu0 0.0
      %415 = vmatpush1.msra.mxu0 0.0
      %416 = vmatprep.subr.mxu0 0.0
      %417 = vmatpush1.msra.mxu0 0.0
      %418 = vmatprep.subr.mxu0 0.0
      %419 = vmatpush1.msra.mxu0 0.0
      %420 = vmatprep.subr.mxu0 0.0
      %421 = vmatpush1.msra.mxu0 0.0
      %422 = vmatprep.subr.mxu0 0.0
      %423 = vmatpush1.msra.mxu0 0.0
      %424 = vmatprep.subr.mxu0 0.0
      %425 = vmatpush1.msra.mxu0 0.0
      %426 = vmatprep.subr.mxu0 0.0
      %427 = vmatpush1.msra.mxu0 0.0
      %428 = vmatprep.subr.mxu0 0.0
      %429 = vmatpush1.msra.mxu0 0.0
      %430 = vmatprep.subr.mxu0 0.0
      %431 = vmatpush1.msra.mxu0 %v285
      %432 = vmatprep.subr.mxu0 0.0
      %433 = vmatpush2.msra.mxu0 0.0
      %434 = vmatprep.subr.mxu0 0.0
      %435 = vmatpush2.msra.mxu0 0.0
      %436 = vmatprep.subr.mxu0 0.0
      %437 = vmatpush2.msra.mxu0 0.0
      %438 = vmatprep.subr.mxu0 0.0
      %439 = vmatpush2.msra.mxu0 0.0
      %440 = vmatprep.subr.mxu0 0.0
      %441 = vmatpush2.msra.mxu0 0.0
      %442 = vmatprep.subr.mxu0 0.0
      %443 = vmatpush2.msra.mxu0 0.0
      %444 = vmatprep.subr.mxu0 0.0
      %445 = vmatpush2.msra.mxu0 0.0
      %446 = vmatprep.subr.mxu0 0.0
      %447 = vmatpush2.msra.mxu0 0.0
      %448 = vmatprep.subr.mxu0 0.0
      %449 = vmatpush2.msra.mxu0 0.0
      %450 = vmatprep.subr.mxu0 0.0
      %451 = vmatpush2.msra.mxu0 0.0
      %452 = vmatprep.subr.mxu0 0.0
      %453 = vmatpush2.msra.mxu0 0.0
      %454 = vmatprep.subr.mxu0 0.0
      %455 = vmatpush2.msra.mxu0 0.0
      %456 = vmatprep.subr.mxu0 0.0
      %457 = vmatpush2.msra.mxu0 0.0
      %458 = vmatprep.subr.mxu0 0.0
      %459 = vmatpush2.msra.mxu0 0.0
      %460 = vmatprep.subr.mxu0 0.0
      %461 = vmatpush2.msra.mxu0 0.0
      %462 = vmatprep.subr.mxu0 0.0
      %463 = vmatpush2.msra.mxu0 0.0
      %464 = vmatprep.mubr.f32.mxu0 0.0
      %465 = vmatmul.mubr.f32.gmra.mxu0 %v257
      %v466 = vpop.f32.mrf.mxu0
      %v467 = vadd.f32 %v248, %v466
      %v468 = vpop.f32.mrf.mxu0
      %469 = vmatprep.mubr.f32.mxu0 0.0
      %470 = vmatmul.mubr.f32.gmra.mxu0 %v260
      %v471 = vpop.f32.mrf.mxu0
      %v472 = vadd.f32 %v248, %v471
      %v473 = vpop.f32.mrf.mxu0
      %474 = vmatprep.mubr.f32.mxu0 0.0
      %475 = vmatmul.mubr.f32.gmra.mxu0 %v263
      %v476 = vpop.f32.mrf.mxu0
      %v477 = vadd.f32 %v248, %v476
      %v478 = vpop.f32.mrf.mxu0
      %479 = vmatprep.mubr.f32.mxu0 0.0
      %480 = vmatmul.mubr.f32.gmra.mxu0 %v266
      %v481 = vpop.f32.mrf.mxu0
      %v482 = vadd.f32 %v248, %v481
      %v483 = vpop.f32.mrf.mxu0
      %484 = vmatprep.mubr.f32.mxu0 0.0
      %485 = vmatmul.mubr.f32.gmra.mxu0 %v269
      %v486 = vpop.f32.mrf.mxu0
      %v487 = vadd.f32 %v248, %v486
      %v488 = vpop.f32.mrf.mxu0
      %489 = vmatprep.mubr.f32.mxu0 0.0
      %490 = vmatmul.mubr.f32.gmra.mxu0 %v272
      %v491 = vpop.f32.mrf.mxu0
      %v492 = vadd.f32 %v248, %v491
      %v493 = vpop.f32.mrf.mxu0
      %494 = vmatprep.mubr.f32.mxu0 0.0
      %495 = vmatmul.mubr.f32.gmra.mxu0 %v275
      %v496 = vpop.f32.mrf.mxu0
      %v497 = vadd.f32 %v248, %v496
      %v498 = vpop.f32.mrf.mxu0
      %499 = vmatprep.mubr.f32.mxu0 0.0
      %500 = vmatmul.mubr.f32.gmra.mxu0 %v278
      %v501 = vpop.f32.mrf.mxu0
      %v502 = vadd.f32 %v248, %v501
      %v503 = vpop.f32.mrf.mxu0
      %504 = vdwg.mxu0
      %v505 = vmax.f32 %v354, -30.0
      %v506 = vmax.f32 %v356, -30.0
      %v507 = vmax.f32 %v360, -30.0
      %v508 = vmax.f32 %v362, -30.0
      %v509 = vmax.f32 %v366, -30.0
      %v510 = vmax.f32 %v368, -30.0
      %v511 = vmax.f32 %v372, -30.0
      %v512 = vmax.f32 %v374, -30.0
      %v513 = vmax.f32 %v378, -30.0
      %v514 = vmax.f32 %v380, -30.0
      %v515 = vmax.f32 %v384, -30.0
      %v516 = vmax.f32 %v386, -30.0
      %v517 = vmax.f32 %v390, -30.0
      %v518 = vmax.f32 %v392, -30.0
      %v519 = vmax.f32 %v396, -30.0
      %v520 = vmax.f32 %v398, -30.0
      %v521 = vsub.f32 0.0, %v505
      %v522 = vsub.f32 0.0, %v506
      %v523 = vsub.f32 0.0, %v507
      %v524 = vsub.f32 0.0, %v508
      %v525 = vsub.f32 0.0, %v509
      %v526 = vsub.f32 0.0, %v510
      %v527 = vsub.f32 0.0, %v511
      %v528 = vsub.f32 0.0, %v512
      %v529 = vsub.f32 0.0, %v513
      %v530 = vsub.f32 0.0, %v514
      %v531 = vsub.f32 0.0, %v515
      %v532 = vsub.f32 0.0, %v516
      %v533 = vsub.f32 0.0, %v517
      %v534 = vsub.f32 0.0, %v518
      %v535 = vsub.f32 0.0, %v519
      %v536 = vsub.f32 0.0, %v520
      %v537 = vmul.f32 %v521, 1.442695
      %v538 = vpow.pop %v537
      %v539 = vmul.f32 %v522, 1.442695
      %v540 = vpow.pop %v539
      %v541 = vmul.f32 %v523, 1.442695
      %v542 = vpow.pop %v541
      %v543 = vmul.f32 %v524, 1.442695
      %v544 = vpow.pop %v543
      %v545 = vmul.f32 %v525, 1.442695
      %v546 = vpow.pop %v545
      %v547 = vmul.f32 %v526, 1.442695
      %v548 = vpow.pop %v547
      %v549 = vmul.f32 %v527, 1.442695
      %v550 = vpow.pop %v549
      %v551 = vmul.f32 %v528, 1.442695
      %v552 = vpow.pop %v551
      %v553 = vmul.f32 %v529, 1.442695
      %v554 = vpow.pop %v553
      %v555 = vmul.f32 %v530, 1.442695
      %v556 = vpow.pop %v555
      %v557 = vmul.f32 %v531, 1.442695
      %v558 = vpow.pop %v557
      %v559 = vmul.f32 %v532, 1.442695
      %v560 = vpow.pop %v559
      %v561 = vmul.f32 %v533, 1.442695
      %v562 = vpow.pop %v561
      %v563 = vmul.f32 %v534, 1.442695
      %v564 = vpow.pop %v563
      %v565 = vmul.f32 %v535, 1.442695
      %v566 = vpow.pop %v565
      %v567 = vmul.f32 %v536, 1.442695
      %v568 = vpow.pop %v567
      %v569 = vadd.f32 %v538, 1.0
      %v570 = vadd.f32 %v542, 1.0
      %v571 = vadd.f32 %v546, 1.0
      %v572 = vadd.f32 %v550, 1.0
      %v573 = vadd.f32 %v554, 1.0
      %v574 = vadd.f32 %v558, 1.0
      %v575 = vadd.f32 %v562, 1.0
      %v576 = vadd.f32 %v566, 1.0
      %v577 = vadd.f32 %v540, 1.0
      %v578 = vadd.f32 %v544, 1.0
      %v579 = vadd.f32 %v548, 1.0
      %v580 = vadd.f32 %v552, 1.0
      %v581 = vadd.f32 %v556, 1.0
      %v582 = vadd.f32 %v560, 1.0
      %v583 = vadd.f32 %v564, 1.0
      %v584 = vadd.f32 %v568, 1.0
      %v585 = vadd.f32 %v569, %v577
      %v586 = vadd.f32 %v570, %v578
      %v587 = vadd.f32 %v571, %v579
      %v588 = vadd.f32 %v572, %v580
      %v589 = vadd.f32 %v573, %v581
      %v590 = vadd.f32 %v574, %v582
      %v591 = vadd.f32 %v575, %v583
      %v592 = vadd.f32 %v576, %v584
      %v593 = vmul.f32 %v569, %v577
      %v594 = vmul.f32 %v570, %v578
      %v595 = vmul.f32 %v571, %v579
      %v596 = vmul.f32 %v572, %v580
      %v597 = vmul.f32 %v573, %v581
      %v598 = vmul.f32 %v574, %v582
      %v599 = vmul.f32 %v575, %v583
      %v600 = vmul.f32 %v576, %v584
      %v601 = vmul.f32 %v593, 1e-08
      %v602 = vmul.f32 %v594, 1e-08
      %v603 = vmul.f32 %v595, 1e-08
      %v604 = vmul.f32 %v596, 1e-08
      %v605 = vmul.f32 %v597, 1e-08
      %v606 = vmul.f32 %v598, 1e-08
      %v607 = vmul.f32 %v599, 1e-08
      %v608 = vmul.f32 %v600, 1e-08
      %v609 = vadd.f32 %v585, %v601
      %v610 = vadd.f32 %v586, %v602
      %v611 = vadd.f32 %v587, %v603
      %v612 = vadd.f32 %v588, %v604
      %v613 = vadd.f32 %v589, %v605
      %v614 = vadd.f32 %v590, %v606
      %v615 = vadd.f32 %v591, %v607
      %v616 = vadd.f32 %v592, %v608
      %v617 = vrcp.pop %v609
      %v618 = vrcp.pop %v610
      %v619 = vrcp.pop %v611
      %v620 = vrcp.pop %v612
      %v621 = vrcp.pop %v613
      %v622 = vrcp.pop %v614
      %v623 = vrcp.pop %v615
      %v624 = vrcp.pop %v616
      %v625 = vmul.f32 %v577, %v617
      %v626 = vmul.f32 %v578, %v618
      %v627 = vmul.f32 %v579, %v619
      %v628 = vmul.f32 %v580, %v620
      %v629 = vmul.f32 %v581, %v621
      %v630 = vmul.f32 %v582, %v622
      %v631 = vmul.f32 %v583, %v623
      %v632 = vmul.f32 %v584, %v624
      %v633 = vmul.f32 %v569, %v617
      %v634 = vmul.f32 %v570, %v618
      %v635 = vmul.f32 %v571, %v619
      %v636 = vmul.f32 %v572, %v620
      %v637 = vmul.f32 %v573, %v621
      %v638 = vmul.f32 %v574, %v622
      %v639 = vmul.f32 %v575, %v623
      %v640 = vmul.f32 %v576, %v624
      %v641 = vmul.f32 %v633, %v467
      %v642 = vmul.f32 %v634, %v472
      %v643 = vmul.f32 %v635, %v477
      %v644 = vmul.f32 %v636, %v482
      %v645 = vmul.f32 %v637, %v487
      %v646 = vmul.f32 %v638, %v492
      %v647 = vmul.f32 %v639, %v497
      %v648 = vmul.f32 %v640, %v502
      %v649 = vadd.f32 %v625, 1e-08
      %v650 = vadd.f32 %v626, 1e-08
      %v651 = vadd.f32 %v627, 1e-08
      %v652 = vadd.f32 %v628, 1e-08
      %v653 = vadd.f32 %v629, 1e-08
      %v654 = vadd.f32 %v630, 1e-08
      %v655 = vadd.f32 %v631, 1e-08
      %v656 = vadd.f32 %v632, 1e-08
      %v657 = vlog2.pop %v649
      %v658 = vmul.f32 %v657, 0.6931472
      %v659 = vlog2.pop %v650
      %v660 = vmul.f32 %v659, 0.6931472
      %v661 = vlog2.pop %v651
      %v662 = vmul.f32 %v661, 0.6931472
      %v663 = vlog2.pop %v652
      %v664 = vmul.f32 %v663, 0.6931472
      %v665 = vlog2.pop %v653
      %v666 = vmul.f32 %v665, 0.6931472
      %v667 = vlog2.pop %v654
      %v668 = vmul.f32 %v667, 0.6931472
      %v669 = vlog2.pop %v655
      %v670 = vmul.f32 %v669, 0.6931472
      %v671 = vlog2.pop %v656
      %v672 = vmul.f32 %v671, 0.6931472
      %v673 = vlaneseq
      %v674 = vshrl.u32 %v673, 7
      %v675 = vadd.s32 %v674, 8
      %v676 = vadd.s32 %v674, 16
      %v677 = vadd.s32 %v674, 24
      %v678 = vadd.s32 %v674, 32
      %v679 = vadd.s32 %v674, 40
      %v680 = vadd.s32 %v674, 48
      %v681 = vadd.s32 %v674, 56
      %vm682 = vcmp.lt.s32.totalorder %v674, 0
      %v683 = vsub.s32 0, %v674
      %v684 = vsel %vm682, %v683, %v674
      %v685 = vshrl.u32 %v684, 3
      %v686 = vand.u32 %v684, 7
      %v687 = vsub.s32 0, %v686
      %v688 = vsel %vm682, %v687, %v686
      %vm689 = vcmp.lt.s32.totalorder %v675, 0
      %v690 = vsub.s32 0, %v675
      %v691 = vsel %vm689, %v690, %v675
      %v692 = vshrl.u32 %v691, 3
      %v693 = vand.u32 %v691, 7
      %v694 = vsub.s32 0, %v693
      %v695 = vsel %vm689, %v694, %v693
      %vm696 = vcmp.lt.s32.totalorder %v676, 0
      %v697 = vsub.s32 0, %v676
      %v698 = vsel %vm696, %v697, %v676
      %v699 = vshrl.u32 %v698, 3
      %v700 = vand.u32 %v698, 7
      %v701 = vsub.s32 0, %v700
      %v702 = vsel %vm696, %v701, %v700
      %vm703 = vcmp.lt.s32.totalorder %v677, 0
      %v704 = vsub.s32 0, %v677
      %v705 = vsel %vm703, %v704, %v677
      %v706 = vshrl.u32 %v705, 3
      %v707 = vand.u32 %v705, 7
      %v708 = vsub.s32 0, %v707
      %v709 = vsel %vm703, %v708, %v707
      %vm710 = vcmp.lt.s32.totalorder %v678, 0
      %v711 = vsub.s32 0, %v678
      %v712 = vsel %vm710, %v711, %v678
      %v713 = vshrl.u32 %v712, 3
      %v714 = vand.u32 %v712, 7
      %v715 = vsub.s32 0, %v714
      %v716 = vsel %vm710, %v715, %v714
      %vm717 = vcmp.lt.s32.totalorder %v679, 0
      %v718 = vsub.s32 0, %v679
      %v719 = vsel %vm717, %v718, %v679
      %v720 = vshrl.u32 %v719, 3
      %v721 = vand.u32 %v719, 7
      %v722 = vsub.s32 0, %v721
      %v723 = vsel %vm717, %v722, %v721
      %vm724 = vcmp.lt.s32.totalorder %v680, 0
      %v725 = vsub.s32 0, %v680
      %v726 = vsel %vm724, %v725, %v680
      %v727 = vshrl.u32 %v726, 3
      %v728 = vand.u32 %v726, 7
      %v729 = vsub.s32 0, %v728
      %v730 = vsel %vm724, %v729, %v728
      %vm731 = vcmp.lt.s32.totalorder %v681, 0
      %v732 = vsub.s32 0, %v681
      %v733 = vsel %vm731, %v732, %v681
      %v734 = vshrl.u32 %v733, 3
      %v735 = vand.u32 %v733, 7
      %v736 = vsub.s32 0, %v735
      %v737 = vsel %vm731, %v736, %v735
      %vm738 = vcmp.ne.s32.totalorder %v688, 0
      %vm739 = vcmp.ne.s32.totalorder %v695, 0
      %vm740 = vcmp.ne.s32.totalorder %v702, 0
      %vm741 = vcmp.ne.s32.totalorder %v709, 0
      %vm742 = vcmp.ne.s32.totalorder %v716, 0
      %vm743 = vcmp.ne.s32.totalorder %v723, 0
      %vm744 = vcmp.ne.s32.totalorder %v730, 0
      %vm745 = vcmp.ne.s32.totalorder %v737, 0
      %vm746 = vcmp.lt.s32.totalorder %v688, 0
      %vm747 = vcmp.lt.s32.totalorder %v695, 0
      %vm748 = vcmp.lt.s32.totalorder %v702, 0
      %vm749 = vcmp.lt.s32.totalorder %v709, 0
      %vm750 = vcmp.lt.s32.totalorder %v716, 0
      %vm751 = vcmp.lt.s32.totalorder %v723, 0
      %vm752 = vcmp.lt.s32.totalorder %v730, 0
      %vm753 = vcmp.lt.s32.totalorder %v737, 0
      %vm754 = vmand %vm746, %vm738
      %vm755 = vmand %vm747, %vm739
      %vm756 = vmand %vm748, %vm740
      %vm757 = vmand %vm749, %vm741
      %vm758 = vmand %vm750, %vm742
      %vm759 = vmand %vm751, %vm743
      %vm760 = vmand %vm752, %vm744
      %vm761 = vmand %vm753, %vm745
      %v762 = vadd.s32 %v688, 8
      %v763 = vadd.s32 %v695, 8
      %v764 = vadd.s32 %v702, 8
      %v765 = vadd.s32 %v709, 8
      %v766 = vadd.s32 %v716, 8
      %v767 = vadd.s32 %v723, 8
      %v768 = vadd.s32 %v730, 8
      %v769 = vadd.s32 %v737, 8
      %v770 = vsel %vm754, %v762, %v688
      %v771 = vsel %vm755, %v763, %v695
      %v772 = vsel %vm756, %v764, %v702
      %v773 = vsel %vm757, %v765, %v709
      %v774 = vsel %vm758, %v766, %v716
      %v775 = vsel %vm759, %v767, %v723
      %v776 = vsel %vm760, %v768, %v730
      %v777 = vsel %vm761, %v769, %v737
      %v778 = vrot.slane %v658, 1
      %v779 = vrot.slane %v660, 1
      %v780 = vrot.slane %v662, 1
      %v781 = vrot.slane %v664, 1
      %v782 = vrot.slane %v666, 1
      %v783 = vrot.slane %v668, 1
      %v784 = vrot.slane %v670, 1
      %v785 = vrot.slane %v672, 1
      %vm786 = vcmp.lt.s32.totalorder %v674, 7
      %v787 = vsel %vm786, %v784, %v785
      %v788 = vsel %vm786, %v783, %v784
      %v789 = vsel %vm786, %v782, %v783
      %v790 = vsel %vm786, %v781, %v782
      %v791 = vsel %vm786, %v780, %v781
      %v792 = vsel %vm786, %v779, %v780
      %v793 = vsel %vm786, %v778, %v779
      %v794 = vsel %vm786, %v785, %v778
      %vm795 = vcmp.lt.s32.totalorder %v770, 7
      %vm796 = vcmp.lt.s32.totalorder %v771, 7
      %vm797 = vcmp.lt.s32.totalorder %v772, 7
      %vm798 = vcmp.lt.s32.totalorder %v773, 7
      %vm799 = vcmp.lt.s32.totalorder %v774, 7
      %vm800 = vcmp.lt.s32.totalorder %v775, 7
      %vm801 = vcmp.lt.s32.totalorder %v776, 7
      %vm802 = vcmp.lt.s32.totalorder %v777, 7
      %v803 = vsel %vm795, %v793, 0.0
      %v804 = vsel %vm796, %v792, 0.0
      %v805 = vsel %vm797, %v791, 0.0
      %v806 = vsel %vm798, %v790, 0.0
      %v807 = vsel %vm799, %v789, 0.0
      %v808 = vsel %vm800, %v788, 0.0
      %v809 = vsel %vm801, %v787, 0.0
      %v810 = vsel %vm802, %v794, 0.0
      %v811 = vadd.f32 %v658, %v803
      %v812 = vadd.f32 %v660, %v804
      %v813 = vadd.f32 %v662, %v805
      %v814 = vadd.f32 %v664, %v806
      %v815 = vadd.f32 %v666, %v807
      %v816 = vadd.f32 %v668, %v808
      %v817 = vadd.f32 %v670, %v809
      %v818 = vadd.f32 %v672, %v810
      %v819 = vrot.slane %v811, 2
      %v820 = vrot.slane %v812, 2
      %v821 = vrot.slane %v813, 2
      %v822 = vrot.slane %v814, 2
      %v823 = vrot.slane %v815, 2
      %v824 = vrot.slane %v816, 2
      %v825 = vrot.slane %v817, 2
      %v826 = vrot.slane %v818, 2
      %vm827 = vcmp.lt.s32.totalorder %v674, 6
      %v828 = vsel %vm827, %v825, %v826
      %v829 = vsel %vm827, %v824, %v825
      %v830 = vsel %vm827, %v823, %v824
      %v831 = vsel %vm827, %v822, %v823
      %v832 = vsel %vm827, %v821, %v822
      %v833 = vsel %vm827, %v820, %v821
      %v834 = vsel %vm827, %v819, %v820
      %v835 = vsel %vm827, %v826, %v819
      %vm836 = vcmp.lt.s32.totalorder %v770, 6
      %vm837 = vcmp.lt.s32.totalorder %v771, 6
      %vm838 = vcmp.lt.s32.totalorder %v772, 6
      %vm839 = vcmp.lt.s32.totalorder %v773, 6
      %vm840 = vcmp.lt.s32.totalorder %v774, 6
      %vm841 = vcmp.lt.s32.totalorder %v775, 6
      %vm842 = vcmp.lt.s32.totalorder %v776, 6
      %vm843 = vcmp.lt.s32.totalorder %v777, 6
      %v844 = vsel %vm836, %v834, 0.0
      %v845 = vsel %vm837, %v833, 0.0
      %v846 = vsel %vm838, %v832, 0.0
      %v847 = vsel %vm839, %v831, 0.0
      %v848 = vsel %vm840, %v830, 0.0
      %v849 = vsel %vm841, %v829, 0.0
      %v850 = vsel %vm842, %v828, 0.0
      %v851 = vsel %vm843, %v835, 0.0
      %v852 = vadd.f32 %v811, %v844
      %v853 = vadd.f32 %v812, %v845
      %v854 = vadd.f32 %v813, %v846
      %v855 = vadd.f32 %v814, %v847
      %v856 = vadd.f32 %v815, %v848
      %v857 = vadd.f32 %v816, %v849
      %v858 = vadd.f32 %v817, %v850
      %v859 = vadd.f32 %v818, %v851
      %v860 = vrot.slane %v852, 4
      %v861 = vrot.slane %v853, 4
      %v862 = vrot.slane %v854, 4
      %v863 = vrot.slane %v855, 4
      %v864 = vrot.slane %v856, 4
      %v865 = vrot.slane %v857, 4
      %v866 = vrot.slane %v858, 4
      %v867 = vrot.slane %v859, 4
      %vm868 = vcmp.lt.s32.totalorder %v674, 4
      %v869 = vsel %vm868, %v866, %v867
      %v870 = vsel %vm868, %v865, %v866
      %v871 = vsel %vm868, %v864, %v865
      %v872 = vsel %vm868, %v863, %v864
      %v873 = vsel %vm868, %v862, %v863
      %v874 = vsel %vm868, %v861, %v862
      %v875 = vsel %vm868, %v860, %v861
      %v876 = vsel %vm868, %v867, %v860
      %vm877 = vcmp.lt.s32.totalorder %v770, 4
      %vm878 = vcmp.lt.s32.totalorder %v771, 4
      %vm879 = vcmp.lt.s32.totalorder %v772, 4
      %vm880 = vcmp.lt.s32.totalorder %v773, 4
      %vm881 = vcmp.lt.s32.totalorder %v774, 4
      %vm882 = vcmp.lt.s32.totalorder %v775, 4
      %vm883 = vcmp.lt.s32.totalorder %v776, 4
      %vm884 = vcmp.lt.s32.totalorder %v777, 4
      %v885 = vsel %vm877, %v875, 0.0
      %v886 = vsel %vm878, %v874, 0.0
      %v887 = vsel %vm879, %v873, 0.0
      %v888 = vsel %vm880, %v872, 0.0
      %v889 = vsel %vm881, %v871, 0.0
      %v890 = vsel %vm882, %v870, 0.0
      %v891 = vsel %vm883, %v869, 0.0
      %v892 = vsel %vm884, %v876, 0.0
      %v893 = vadd.f32 %v852, %v885
      %v894 = vadd.f32 %v853, %v886
      %v895 = vadd.f32 %v854, %v887
      %v896 = vadd.f32 %v855, %v888
      %v897 = vadd.f32 %v856, %v889
      %v898 = vadd.f32 %v857, %v890
      %v899 = vadd.f32 %v858, %v891
      %v900 = vadd.f32 %v859, %v892
      %v901 = vmul.f32 %v893, 1.442695
      %v902 = vpow.pop %v901
      %v903 = vmul.f32 %v894, 1.442695
      %v904 = vpow.pop %v903
      %v905 = vmul.f32 %v895, 1.442695
      %v906 = vpow.pop %v905
      %v907 = vmul.f32 %v896, 1.442695
      %v908 = vpow.pop %v907
      %v909 = vmul.f32 %v897, 1.442695
      %v910 = vpow.pop %v909
      %v911 = vmul.f32 %v898, 1.442695
      %v912 = vpow.pop %v911
      %v913 = vmul.f32 %v899, 1.442695
      %v914 = vpow.pop %v913
      %v915 = vmul.f32 %v900, 1.442695
      %v916 = vpow.pop %v915
      %v917 = vmul.f32 %v902, %v641
      %v918 = vmul.f32 %v904, %v642
      %v919 = vmul.f32 %v906, %v643
      %v920 = vmul.f32 %v908, %v644
      %v921 = vmul.f32 %v910, %v645
      %v922 = vmul.f32 %v912, %v646
      %v923 = vmul.f32 %v914, %v647
      %v924 = vmul.f32 %v916, %v648
      %v925 = vrot.slane %v917, 4
      %v926 = vadd.f32 %v917, %v925
      %v927 = vrot.slane %v926, 2
      %v928 = vadd.f32 %v926, %v927
      %v929 = vrot.slane %v928, 1
      %v930 = vadd.f32 %v928, %v929
      %v931 = vrot.slane %v918, 4
      %v932 = vadd.f32 %v918, %v931
      %v933 = vrot.slane %v932, 2
      %v934 = vadd.f32 %v932, %v933
      %v935 = vrot.slane %v934, 1
      %v936 = vadd.f32 %v934, %v935
      %v937 = vrot.slane %v919, 4
      %v938 = vadd.f32 %v919, %v937
      %v939 = vrot.slane %v938, 2
      %v940 = vadd.f32 %v938, %v939
      %v941 = vrot.slane %v940, 1
      %v942 = vadd.f32 %v940, %v941
      %v943 = vrot.slane %v920, 4
      %v944 = vadd.f32 %v920, %v943
      %v945 = vrot.slane %v944, 2
      %v946 = vadd.f32 %v944, %v945
      %v947 = vrot.slane %v946, 1
      %v948 = vadd.f32 %v946, %v947
      %v949 = vrot.slane %v921, 4
      %v950 = vadd.f32 %v921, %v949
      %v951 = vrot.slane %v950, 2
      %v952 = vadd.f32 %v950, %v951
      %v953 = vrot.slane %v952, 1
      %v954 = vadd.f32 %v952, %v953
      %v955 = vrot.slane %v922, 4
      %v956 = vadd.f32 %v922, %v955
      %v957 = vrot.slane %v956, 2
      %v958 = vadd.f32 %v956, %v957
      %v959 = vrot.slane %v958, 1
      %v960 = vadd.f32 %v958, %v959
      %v961 = vrot.slane %v923, 4
      %v962 = vadd.f32 %v923, %v961
      %v963 = vrot.slane %v962, 2
      %v964 = vadd.f32 %v962, %v963
      %v965 = vrot.slane %v964, 1
      %v966 = vadd.f32 %v964, %v965
      %v967 = vrot.slane %v924, 4
      %v968 = vadd.f32 %v924, %v967
      %v969 = vrot.slane %v968, 2
      %v970 = vadd.f32 %v968, %v969
      %v971 = vrot.slane %v970, 1
      %v972 = vadd.f32 %v970, %v971
      %v973 = vld [vmem:[%s3] sm:$0xff]
      %v974 = vld [vmem:[%s3 + $0x8] sm:$0xff]
      %v975 = vld [vmem:[%s3 + $0x10] sm:$0xff]
      %v976 = vld [vmem:[%s3 + $0x18] sm:$0xff]
      %v977 = vld [vmem:[%s3 + $0x20] sm:$0xff]
      %v978 = vld [vmem:[%s3 + $0x28] sm:$0xff]
      %v979 = vld [vmem:[%s3 + $0x30] sm:$0xff]
      %v980 = vld [vmem:[%s3 + $0x38] sm:$0xff]
      %v981 = vld [vmem:[%s3 + $0x40] sm:$0xff]
      %v982 = vld [vmem:[%s3 + $0x48] sm:$0xff]
      %v983 = vld [vmem:[%s3 + $0x50] sm:$0xff]
      %v984 = vld [vmem:[%s3 + $0x58] sm:$0xff]
      %v985 = vld [vmem:[%s3 + $0x60] sm:$0xff]
      %v986 = vld [vmem:[%s3 + $0x68] sm:$0xff]
      %v987 = vld [vmem:[%s3 + $0x70] sm:$0xff]
      %v988 = vld [vmem:[%s3 + $0x78] sm:$0xff]
      %v989 = vld [vmem:[%s4] sm:$0x1]
      %v991 = vlaneseq
      %v992 = vshrl.u32 %v991, 7
      %v993 = vsub.s32 0, %v992
      %v994 = vrot.slane %v989, %v993
      %vm1004 = vcmask 1041409
      %v1005 = vsel %vm1004, %v936, %v930
      %vm1006 = vcmask 1042434
      %v1007 = vsel %vm1006, %v942, %v1005
      %vm1008 = vcmask 1043459
      %v1009 = vsel %vm1008, %v948, %v1007
      %vm1010 = vcmask 1044484
      %v1011 = vsel %vm1010, %v954, %v1009
      %vm1012 = vcmask 1045509
      %v1013 = vsel %vm1012, %v960, %v1011
      %vm1014 = vcmask 1046534
      %v1015 = vsel %vm1014, %v966, %v1013
      %vm1016 = vcmask 1047559
      %v1017 = vsel %vm1016, %v972, %v1015
      %1019 = vmatprep.subr.mxu0 0.0
      %1020 = vmatpush1.msra.mxu0 %v988
      %1021 = vmatprep.subr.mxu0 0.0
      %1022 = vmatpush1.msra.mxu0 %v987
      %1023 = vmatprep.subr.mxu0 0.0
      %1024 = vmatpush1.msra.mxu0 %v986
      %1025 = vmatprep.subr.mxu0 0.0
      %1026 = vmatpush1.msra.mxu0 %v985
      %1027 = vmatprep.subr.mxu0 0.0
      %1028 = vmatpush1.msra.mxu0 %v984
      %1029 = vmatprep.subr.mxu0 0.0
      %1030 = vmatpush1.msra.mxu0 %v983
      %1031 = vmatprep.subr.mxu0 0.0
      %1032 = vmatpush1.msra.mxu0 %v982
      %1033 = vmatprep.subr.mxu0 0.0
      %1034 = vmatpush1.msra.mxu0 %v981
      %1035 = vmatprep.subr.mxu0 0.0
      %1036 = vmatpush1.msra.mxu0 %v980
      %1037 = vmatprep.subr.mxu0 0.0
      %1038 = vmatpush1.msra.mxu0 %v979
      %1039 = vmatprep.subr.mxu0 0.0
      %1040 = vmatpush1.msra.mxu0 %v978
      %1041 = vmatprep.subr.mxu0 0.0
      %1042 = vmatpush1.msra.mxu0 %v977
      %1043 = vmatprep.subr.mxu0 0.0
      %1044 = vmatpush1.msra.mxu0 %v976
      %1045 = vmatprep.subr.mxu0 0.0
      %1046 = vmatpush1.msra.mxu0 %v975
      %1047 = vmatprep.subr.mxu0 0.0
      %1048 = vmatpush1.msra.mxu0 %v974
      %1049 = vmatprep.subr.mxu0 0.0
      %1050 = vmatpush1.msra.mxu0 %v973
      %1051 = vmatprep.subr.mxu0 0.0
      %1052 = vmatpush2.msra.mxu0 0.0
      %1053 = vmatprep.subr.mxu0 0.0
      %1054 = vmatpush2.msra.mxu0 0.0
      %1055 = vmatprep.subr.mxu0 0.0
      %1056 = vmatpush2.msra.mxu0 0.0
      %1057 = vmatprep.subr.mxu0 0.0
      %1058 = vmatpush2.msra.mxu0 0.0
      %1059 = vmatprep.subr.mxu0 0.0
      %1060 = vmatpush2.msra.mxu0 0.0
      %1061 = vmatprep.subr.mxu0 0.0
      %1062 = vmatpush2.msra.mxu0 0.0
      %1063 = vmatprep.subr.mxu0 0.0
      %1064 = vmatpush2.msra.mxu0 0.0
      %1065 = vmatprep.subr.mxu0 0.0
      %1066 = vmatpush2.msra.mxu0 0.0
      %1067 = vmatprep.subr.mxu0 0.0
      %1068 = vmatpush2.msra.mxu0 0.0
      %1069 = vmatprep.subr.mxu0 0.0
      %1070 = vmatpush2.msra.mxu0 0.0
      %1071 = vmatprep.subr.mxu0 0.0
      %1072 = vmatpush2.msra.mxu0 0.0
      %1073 = vmatprep.subr.mxu0 0.0
      %1074 = vmatpush2.msra.mxu0 0.0
      %1075 = vmatprep.subr.mxu0 0.0
      %1076 = vmatpush2.msra.mxu0 0.0
      %1077 = vmatprep.subr.mxu0 0.0
      %1078 = vmatpush2.msra.mxu0 0.0
      %1079 = vmatprep.subr.mxu0 0.0
      %1080 = vmatpush2.msra.mxu0 0.0
      %1081 = vmatprep.subr.mxu0 0.0
      %1082 = vmatpush2.msra.mxu0 0.0
      %1083 = vmatprep.mubr.f32.mxu0 0.0
      %1084 = vmatmul.mubr.f32.gmra.mxu0 %v1017
      %v1085 = vpop.f32.mrf.mxu0
      %v1086 = vadd.f32 %v994, %v1085
      %v1087 = vpop.f32.mrf.mxu0
      %1088 = vdwg.mxu0
      %1089 = vst.msk [vmem:[%s224] sm:$0xff] %vm255, %v1086
      %p1090 = scmp.lt.s32.totalorder %s16, 1
      %s1091 = scalar_select %p1090, %s16, 1
      %s1092 = smul.addr %s1091, 8
      %s1093 = scalar_lea.vmem %s5, %s1092
      // Predicated region
      $region41: #{tpu_custom_call.1} parent=39 // pred_check
        %p1094 = pneg %p144
      $region42: #{tpu_custom_call.1} parent=39 // pred_check_branch
        %1096 = sbr.rel (%p1094) target = $region44
      $region43: #{tpu_custom_call.1} parent=39 // pred_region
        _
      $region44: #{tpu_custom_call.1} parent=39 // pred_fallthru
        _
    $region40: #{tpu_custom_call.1} parent=5 // pred_fallthru
      _
    %p1097 = scmp.le.s32.totalorder 2, %s11
    // Predicated region
    $region45: #{tpu_custom_call.1} parent=5 // pred_check
      %p1098 = pneg %p1097
    $region46: #{tpu_custom_call.1} parent=5 // pred_check_branch
      %1100 = sbr.rel (%p1098) target = $region48
    $region47: #{tpu_custom_call.1} parent=5 // pred_region
      %s1101 = ssub.s32 %s11, 2
      // Predicated region
      $region49: #{tpu_custom_call.1} parent=47 // pred_check
        %p1102 = pneg %p150
      $region50: #{tpu_custom_call.1} parent=47 // pred_check_branch
        %1104 = sbr.rel (%p1102) target = $region52
      $region51: #{tpu_custom_call.1} parent=47 // pred_region
        %p1105 = scmp.lt.s32.totalorder %s17, 1
        %s1106 = scalar_select %p1105, %s17, 1
        %s1107 = smul.addr %s1106, 8
        %s1108 = scalar_lea.vmem %s5, %s1107
      $region52: #{tpu_custom_call.1} parent=47 // pred_fallthru
        _
    $region48: #{tpu_custom_call.1} parent=5 // pred_fallthru
      _
  $region6: #{tpu_custom_call.1} parent=0 // loop_footer
    %s15 = sadd.s32 1, %s11
  $region7: #{tpu_custom_call.1} parent=0 // loop_footer_branch
    %10 = sbr.rel target = $region3
  $region8: #{tpu_custom_call.1} parent=0 // loop_exit
    _

</llo_original>
